<compile_context>
chip_gen: v7x
topology: tpu7x:2x2x1
jax: 0.10.0
libtpu: 0.0.40
codegen_flags: <defaults>
</compile_context>

<pallas_src>
import jax
import jax.numpy as jnp
from jax.experimental import pallas as pl
from jax.experimental.pallas import tpu as pltpu

LANES = 128  # the parameter vector occupies one full vreg lane row


def _rosenbrock_kernel(n_ref, theta_ref, out_ref):
    # n_ref:     (1,)       int32 in SMEM  (valid parameter count)
    # theta_ref: (1, LANES) f32   in VMEM  (lanes [0, n) valid, rest padded 1.0)
    # out_ref:   (1, 1)     f32   in SMEM  (scalar result)
    theta = theta_ref[...]
    n = n_ref[0]
    lane = jax.lax.broadcasted_iota(jnp.int32, theta.shape, 1)

    # shifted[i] = theta[(i + 1) % LANES]  (XLU lane rotation, jnp.roll semantics)
    shifted = pltpu.roll(theta, shift=LANES - 1, axis=1)

    # tmp0 = theta[1:] - theta[:-1]; mask covers both the pad boundary (lane n-1)
    # and the wrap-around lane (LANES-1).
    diff = jnp.where(lane < n - 1, shifted - theta, 0.0)
    # tmp1 = 1 - theta; padded lanes hold 1.0, so this term is already 0 there.
    one_minus = 1.0 - theta

    # Single fused reduction (one XLU reduce instead of two).
    out_ref[0, 0] = jnp.sum(100.0 * (diff * diff) + one_minus * one_minus)


def rosenbrock_pallas(theta):
    """theta: 1-D array of shape (n,), 1 < n <= 128. Returns scalar float32."""
    n = theta.shape[0]
    assert n > 1
    assert n <= LANES, "single-row kernel; larger n needs a gridded/sublane variant"

    # Pad with 1.0 (not 0.0) so (1 - theta) vanishes on the padded lanes.
    theta_row = theta.astype(jnp.float32).reshape(1, n)
    theta_pad = jnp.pad(theta_row, ((0, 0), (0, LANES - n)), constant_values=1.0)
    n_arr = jnp.array([n], dtype=jnp.int32)

    out = pl.pallas_call(
        _rosenbrock_kernel,
        out_shape=jax.ShapeDtypeStruct((1, 1), jnp.float32),
        in_specs=[
            pl.BlockSpec(memory_space=pltpu.MemorySpace.SMEM),   # n (scalar)
            pl.BlockSpec(memory_space=pltpu.MemorySpace.VMEM),   # theta row
        ],
        out_specs=pl.BlockSpec(memory_space=pltpu.MemorySpace.SMEM),
    )(n_arr, theta_pad)
    return out[0, 0]


def rosenbrock_ref(theta):
    theta = theta.astype(jnp.float32)
    tmp0 = theta[1:] - theta[:-1]
    tmp1 = 1.0 - theta
    return 100.0 * jnp.dot(tmp0, tmp0) + jnp.dot(tmp1, tmp1)


if __name__ == "__main__":
    num_parameter = 8  # module default is 3; any 1 < n <= 128 works here
    key = jax.random.PRNGKey(0)
    # Deterministic stand-in for np_rng.normal(size=num_parameter)
    theta = jax.random.normal(key, (num_parameter,), dtype=jnp.float32)

    out = rosenbrock_pallas(theta)
    jax.block_until_ready(out)

    ref = rosenbrock_ref(theta)
    assert jnp.allclose(out, ref, rtol=1e-5, atol=1e-5), (out, ref)
    print("KERNEL_OK")
</pallas_src>

<mosaic_0001>
module attributes {stable_mosaic.version = 11 : i64} {
  func.func @_rosenbrock_kernel(%arg0: memref<1xi32, #tpu.memory_space<smem>>, %arg1: memref<1x128xf32, #tpu.memory_space<vmem>>, %arg2: memref<1x1xf32, #tpu.memory_space<smem>>) attributes {dimension_semantics = [], scalar_prefetch = 0 : i64, scratch_operands = 0 : i64, tpu.core_type = #tpu.core_type<tc>} {
    %c0 = arith.constant 0 : index
    %c0_0 = arith.constant 0 : index
    %0 = vector.load %arg1[%c0, %c0_0] : memref<1x128xf32, #tpu.memory_space<vmem>>, vector<1x128xf32>
    %c0_1 = arith.constant 0 : index
    %1 = memref.load %arg0[%c0_1] : memref<1xi32, #tpu.memory_space<smem>>
    %2 = tpu.iota {dimensions = array<i32: 1>} : vector<1x128xi32>
    %c127_i32 = arith.constant 127 : i32
    %3 = tpu.dynamic_rotate %0 by %c127_i32 dim 1 : vector<1x128xf32>, i32 -> vector<1x128xf32>
    %c1_i32 = arith.constant 1 : i32
    %4 = arith.subi %1, %c1_i32 : i32
    %5 = vector.broadcast %4 : i32 to vector<1x128xi32>
    %6 = arith.cmpi slt, %2, %5 : vector<1x128xi32>
    %7 = arith.subf %3, %0 : vector<1x128xf32>
    %cst = arith.constant 0.000000e+00 : f32
    %8 = vector.broadcast %cst : f32 to vector<1x128xf32>
    %9 = arith.select %6, %7, %8 : vector<1x128xi1>, vector<1x128xf32>
    %cst_2 = arith.constant 1.000000e+00 : f32
    %10 = vector.broadcast %cst_2 : f32 to vector<1x128xf32>
    %11 = arith.subf %10, %0 : vector<1x128xf32>
    %12 = arith.mulf %9, %9 : vector<1x128xf32>
    %cst_3 = arith.constant 1.000000e+02 : f32
    %13 = vector.broadcast %cst_3 : f32 to vector<1x128xf32>
    %14 = arith.mulf %13, %12 : vector<1x128xf32>
    %15 = arith.mulf %11, %11 : vector<1x128xf32>
    %16 = arith.addf %14, %15 : vector<1x128xf32>
    %17 = vector.shape_cast %16 : vector<1x128xf32> to vector<1x1x128xf32>
    %cst_4 = arith.constant dense<0.000000e+00> : vector<1xf32>
    %18 = vector.multi_reduction <add>, %17, %cst_4 [1, 2] : vector<1x1x128xf32> to vector<1xf32>
    %19 = vector.shape_cast %18 : vector<1xf32> to vector<1x1x1xf32>
    %20 = vector.extract %19[0, 0, 0] : f32 from vector<1x1x1xf32>
    %c0_5 = arith.constant 0 : index
    %c0_6 = arith.constant 0 : index
    %21 = memref.load %arg2[%c0_5, %c0_6] : memref<1x1xf32, #tpu.memory_space<smem>>
    memref.store %20, %arg2[%c0_5, %c0_6] : memref<1x1xf32, #tpu.memory_space<smem>>
    return
  }
}

</mosaic_0001>

<llo_original>
// kernel: tpu_custom_call.1
$region0: #{tpu_custom_call.1}
  #allocation0 [shape = 'u32[]', space=smem, size = 0x4, offset = 0x4, fixed_abs, tag = 'smem constant byte address 0x4 - core index']
  #allocation1 [shape = 'u32[144,128]{1,0:T(1,128)}', space=vmem, size = 0x12000, scoped, tag = 'internal scratch']
  #allocation2 [shape = 's32[1]{0:T(128)S(6)}', space=smem, size = 0x200, scoped, tag = 'scoped memory for tpu_custom_call.1']
  %s0 = inlined_call_operand.<no memory space> [shape: s32[1], index: 0, kind: input, shape index: {}]
  %s1 = inlined_call_operand.vmem [shape: f32[1,128], index: 1, kind: input, shape index: {}]
  %s2 = inlined_call_operand.hbm [shape: f32[1,1], index: 2, kind: output, shape index: {}]
  %s3 = sld [smem:[#allocation0]]
  $region18: #{tpu_custom_call.1} parent=0
    _
  %s5 = ssub.s32 1, %s3
  %s6 = scalar_select 0, %s5, %s3
  %7 = sst [smem:[#allocation2]] %s0
  $region1: #{tpu_custom_call.1} parent=0
    #allocation3 [shape = 'u8[512]{0}', space=smem, size = 0x200, scoped, tag = 'output window, operand 0, single buffered']
    #allocation4 [shape = 's32[1]{0}', space=sflag, size = 0x4, scoped, tag = 'scoped memory for tpu_custom_call.1']
    %8 = vsyncpa [#allocation4], 0
    // Predicated region
    $region2: #{tpu_custom_call.1} parent=1 // pred_check
      _
    $region3: #{tpu_custom_call.1} parent=1 // pred_check_branch
      %10 = sbr.rel (0) target = $region5
    $region4: #{tpu_custom_call.1} parent=1 // pred_region
      _
    $region5: #{tpu_custom_call.1} parent=1 // pred_fallthru
      _
    // Predicated region
    $region6: #{tpu_custom_call.1} parent=1 // pred_check
      _
    $region7: #{tpu_custom_call.1} parent=1 // pred_check_branch
      %12 = sbr.rel (0) target = $region9
    $region8: #{tpu_custom_call.1} parent=1 // pred_region
      _
    $region9: #{tpu_custom_call.1} parent=1 // pred_fallthru
      _
    %v13 = vld [vmem:[%s1] sm:$0x1]
    %s14 = sld [smem:[#allocation2]]
    %v15 = vlaneseq
    %v16 = vand.u32 %v15, 127
    %17 = vrot.lane.b32.xlu0 %v13, 127
    %v18 = vpop.permute.xlu0 %17
    %s19 = ssub.s32 %s14, 1
    %v20 = vstv %s19
    %vm21 = vcmp.lt.s32.totalorder %v16, %v20
    %v22 = vsub.f32 %v18, %v13
    %v23 = vsel %vm21, %v22, 0.0
    %v24 = vsub.f32 1.0, %v13
    %v25 = vmul.f32 %v23, %v23
    %v26 = vmul.f32 %v25, 100.0
    %v27 = vmul.f32 %v24, %v24
    %v28 = vadd.f32 %v26, %v27
    %vm29 = vcmask 1040384
    %v30 = vsel %vm29, %v28, 0.0
    %31 = vadd.xlane.f32.xlu0 %v30
    %v32 = vpop.xlane.xlu0 %31
    %v33 = vrot.slane %v32, 4
    %v34 = vadd.f32 %v32, %v33
    %v35 = vrot.slane %v34, 2
    %v36 = vadd.f32 %v34, %v35
    %v37 = vrot.slane %v36, 1
    %v38 = vadd.f32 %v36, %v37
    %s39 = vtos %v38
    %s40 = scalar_lea.smem [#allocation3], 0
    %41 = sst [smem:[%s40]] %s39
    // Predicated region
    $region10: #{tpu_custom_call.1} parent=1 // pred_check
      _
    $region11: #{tpu_custom_call.1} parent=1 // pred_check_branch
      %43 = sbr.rel (0) target = $region13
    $region12: #{tpu_custom_call.1} parent=1 // pred_region
      %s45 = ssub.s32 16, 16
      %46 = vsyncadd [#allocation4], %s45
      %49 = dma.smem_to_hbm [#allocation3], 16, %s2, [#allocation4]
    $region13: #{tpu_custom_call.1} parent=1 // pred_fallthru
      _
    // Predicated region
    $region14: #{tpu_custom_call.1} parent=1 // pred_check
      _
    $region15: #{tpu_custom_call.1} parent=1 // pred_check_branch
      %51 = sbr.rel (0) target = $region17
    $region16: #{tpu_custom_call.1} parent=1 // pred_region
      %52 = dma.done [#allocation4], 16
    $region17: #{tpu_custom_call.1} parent=1 // pred_fallthru
      _
    %53 = sfence
    %54 = vsyncpa [#allocation4], 1

</llo_original>
